<compile_context>
chip_gen: v7x
topology: tpu7x:2x2x1
jax: 0.10.0
libtpu: 0.0.40
codegen_flags: <defaults>
</compile_context>

<pallas_src>
import functools

import jax
import jax.numpy as jnp
from jax import lax
from jax.experimental import pallas as pl
from jax.experimental.pallas import tpu as pltpu

EPS = 1e-5


def _round_up(x: int, m: int) -> int:
    return (x + m - 1) // m * m


def postnorm_kernel(x_ref, w_ref, b_ref, gamma_ref, beta_ref, factor_ref,
                    o_ref, *, inv_d):
    # x_ref:     (BR, Dp) tile of flattened (padded) inputs, native dtype
    # w_ref:     (Dp, Dp) Linear weight (x @ W layout), zero-padded
    # b_ref:     (1, Dp)  Linear bias (zero-padded)
    # gamma_ref: (1, Dp)  LayerNorm weight (zero-padded)
    # beta_ref:  (1, Dp)  LayerNorm bias (zero-padded)
    # factor_ref:(1,)     SMEM scalar input_factor
    x = x_ref[...]

    # module(inputs): Linear — operands stay in the input dtype (bf16 MXU fast
    # path on v6e/v7x); accumulate in f32.
    mod = jnp.dot(x, w_ref[...], preferred_element_type=jnp.float32)

    # scaled residual: module(x) + x * input_factor   (f32 math from here on)
    y = (mod + b_ref[...].astype(jnp.float32)
         + x.astype(jnp.float32) * factor_ref[0])

    # LayerNorm over the real D columns. Padded columns of y are exactly 0
    # (zero-padded x / w / b), so sums over Dp equal sums over D; divide by
    # the true D via inv_d. Fused single pass: var = E[y^2] - mean^2.
    s1 = jnp.sum(y, axis=-1, keepdims=True)
    s2 = jnp.sum(y * y, axis=-1, keepdims=True)
    mean = s1 * inv_d
    var = jnp.maximum(s2 * inv_d - mean * mean, 0.0)
    norm = (y - mean) * lax.rsqrt(var + EPS)

    o_ref[...] = (norm * gamma_ref[...].astype(jnp.float32)
                  + beta_ref[...].astype(jnp.float32)).astype(o_ref.dtype)


def postnorm(x, w, b, gamma, beta, input_factor, *,
             block_rows=512, vmem_budget=24 << 20):
    """x: (B, S, D). Returns LayerNorm(x @ w + b + x * input_factor)."""
    B, S, D = x.shape
    R = B * S

    itemsize = jnp.dtype(x.dtype).itemsize
    w_itemsize = jnp.dtype(w.dtype).itemsize
    row_align = {4: 8, 2: 16, 1: 32}.get(itemsize, 8)

    # Lane-dense feature dim: pad D up to a multiple of 128.
    Dp = max(128, _round_up(D, 128))

    # Largest row tile (multiple of the sublane packing, capped at block_rows)
    # that fits the VMEM budget; x/out tiles and the grid-invariant operands
    # are all counted as double-buffered (the pipeline default).
    def _vmem_bytes(rows):
        return (2 * rows * Dp * itemsize        # x tile (double-buffered)
                + 2 * rows * Dp * itemsize      # out tile (double-buffered)
                + 2 * Dp * Dp * w_itemsize      # weight (grid-invariant)
                + 2 * 3 * Dp * 4)               # bias / gamma / beta

    br = _round_up(min(block_rows, _round_up(R, row_align)), row_align)
    while _vmem_bytes(br) > vmem_budget and br > row_align:
        br = _round_up(max(row_align, br // 2), row_align)

    Rp = _round_up(R, br)
    vmem_limit = int(min(48 << 20, max(2 * _vmem_bytes(br), 16 << 20)))

    # Layout plumbing in the wrapper: flatten + zero-pad rows and features.
    x2 = jnp.pad(x.reshape(R, D), ((0, Rp - R), (0, Dp - D)))
    wp = jnp.pad(w, ((0, Dp - D), (0, Dp - D)))
    bp = jnp.pad(b, (0, Dp - D)).reshape(1, Dp)
    gp = jnp.pad(gamma, (0, Dp - D)).reshape(1, Dp)
    betap = jnp.pad(beta, (0, Dp - D)).reshape(1, Dp)
    factor = jnp.asarray(input_factor, jnp.float32).reshape(1)

    kernel = functools.partial(postnorm_kernel, inv_d=1.0 / D)

    out = pl.pallas_call(
        kernel,
        out_shape=jax.ShapeDtypeStruct((Rp, Dp), x.dtype),
        grid_spec=pltpu.PrefetchScalarGridSpec(
            num_scalar_prefetch=0,
            grid=(Rp // br,),
            in_specs=[
                pl.BlockSpec((br, Dp), lambda i: (i, 0)),   # x tile
                pl.BlockSpec((Dp, Dp), lambda i: (0, 0)),   # weight (resident)
                pl.BlockSpec((1, Dp), lambda i: (0, 0)),    # bias
                pl.BlockSpec((1, Dp), lambda i: (0, 0)),    # gamma
                pl.BlockSpec((1, Dp), lambda i: (0, 0)),    # beta
                pl.BlockSpec(memory_space=pltpu.SMEM),      # input_factor
            ],
            out_specs=pl.BlockSpec((br, Dp), lambda i: (i, 0)),
        ),
        compiler_params=pltpu.CompilerParams(
            dimension_semantics=("parallel",),   # row tiles shard across TCs on v7x
            vmem_limit_bytes=vmem_limit),
    )(x2, wp, bp, gp, betap, factor)

    return out[:R, :D].reshape(B, S, D)


def postnorm_ref(x, w, b, gamma, beta, input_factor):
    x, w, b = x.astype(jnp.float32), w.astype(jnp.float32), b.astype(jnp.float32)
    gamma, beta = gamma.astype(jnp.float32), beta.astype(jnp.float32)
    y = jnp.einsum("bsd,de->bse", x, w) + b + x * input_factor
    mean = jnp.mean(y, axis=-1, keepdims=True)
    var = jnp.mean((y - mean) ** 2, axis=-1, keepdims=True)
    return (y - mean) * lax.rsqrt(var + EPS) * gamma + beta


if __name__ == "__main__":
    key = jax.random.PRNGKey(0)
    input_factor = 1.0                    # args.alpha not set -> tensor(1.0)

    # --- test 1: f32, small conformer-ish shapes (LayerNorm dim = 32) -------
    B, S, D = 2, 8, 32
    kx, kw, kb = jax.random.split(key, 3)
    x = jax.random.normal(kx, (B, S, D), dtype=jnp.float32)
    w = jax.random.normal(kw, (D, D), dtype=jnp.float32) * (1.0 / jnp.sqrt(D))
    b = jax.random.normal(kb, (D,), dtype=jnp.float32) * 0.01
    gamma = jnp.ones((D,), jnp.float32)   # nn.LayerNorm default weight
    beta = jnp.zeros((D,), jnp.float32)   # nn.LayerNorm default bias

    out = jax.block_until_ready(postnorm(x, w, b, gamma, beta, input_factor))
    ref = postnorm_ref(x, w, b, gamma, beta, input_factor)
    assert out.shape == (B, S, D)
    assert jnp.allclose(out, ref, atol=1e-4, rtol=1e-4), "f32 mismatch"

    # --- test 2: bf16 fast path, ragged rows, padded D, multi-step grid -----
    B2, S2, D2 = 3, 345, 96
    k1, k2, k3 = jax.random.split(jax.random.PRNGKey(1), 3)
    x2 = jax.random.normal(k1, (B2, S2, D2), dtype=jnp.float32).astype(jnp.bfloat16)
    w2 = (jax.random.normal(k2, (D2, D2), dtype=jnp.float32)
          / jnp.sqrt(D2)).astype(jnp.bfloat16)
    b2 = (jax.random.normal(k3, (D2,), dtype=jnp.float32) * 0.01).astype(jnp.bfloat16)
    g2 = jnp.ones((D2,), jnp.bfloat16)
    be2 = jnp.zeros((D2,), jnp.bfloat16)

    out2 = jax.block_until_ready(postnorm(x2, w2, b2, g2, be2, input_factor))
    ref2 = postnorm_ref(x2, w2, b2, g2, be2, input_factor)
    assert out2.shape == (B2, S2, D2)
    assert jnp.allclose(out2.astype(jnp.float32), ref2,
                        atol=5e-2, rtol=5e-2), "bf16 mismatch"

    print("KERNEL_OK")
</pallas_src>

<mosaic_0001>
module attributes {stable_mosaic.version = 11 : i64} {
  func.func @postnorm_kernel(%arg0: i32, %arg1: memref<16x128xf32, #tpu.memory_space<vmem>>, %arg2: memref<128x128xf32, #tpu.memory_space<vmem>>, %arg3: memref<1x128xf32, #tpu.memory_space<vmem>>, %arg4: memref<1x128xf32, #tpu.memory_space<vmem>>, %arg5: memref<1x128xf32, #tpu.memory_space<vmem>>, %arg6: memref<1xf32, #tpu.memory_space<smem>>, %arg7: memref<16x128xf32, #tpu.memory_space<vmem>>) attributes {dimension_semantics = [#tpu.dimension_semantics<parallel>], iteration_bounds = array<i64: 1>, scalar_prefetch = 0 : i64, scratch_operands = 0 : i64, tpu.core_type = #tpu.core_type<tc>, window_params = [{transform_indices = @transform_0, window_bounds = array<i64: 16, 128>}, {pipeline_mode = #tpu.pipeline_mode<synchronous>, transform_indices = @transform_1, window_bounds = array<i64: 128, 128>}, {pipeline_mode = #tpu.pipeline_mode<synchronous>, transform_indices = @transform_2, window_bounds = array<i64: 1, 128>}, {pipeline_mode = #tpu.pipeline_mode<synchronous>, transform_indices = @transform_3, window_bounds = array<i64: 1, 128>}, {pipeline_mode = #tpu.pipeline_mode<synchronous>, transform_indices = @transform_4, window_bounds = array<i64: 1, 128>}, {transform_indices = @transform_5, window_bounds = array<i64: 1>}, {transform_indices = @transform_6, window_bounds = array<i64: 16, 128>}]} {
    %c0 = arith.constant 0 : index
    %c0_0 = arith.constant 0 : index
    %0 = vector.load %arg1[%c0, %c0_0] : memref<16x128xf32, #tpu.memory_space<vmem>>, vector<16x128xf32>
    %c0_1 = arith.constant 0 : index
    %c0_2 = arith.constant 0 : index
    %1 = vector.load %arg2[%c0_1, %c0_2] : memref<128x128xf32, #tpu.memory_space<vmem>>, vector<128x128xf32>
    %cst = arith.constant dense<0.000000e+00> : vector<16x128xf32>
    %2 = tpu.matmul %0, %1, %cst {dimension_numbers = #tpu.dot_dimension_numbers<[1], [0], [0], [1], [0, 0, 1, 1], [], []>} : vector<16x128xf32>, vector<128x128xf32>, vector<16x128xf32> -> vector<16x128xf32>
    %c0_3 = arith.constant 0 : index
    %c0_4 = arith.constant 0 : index
    %3 = vector.load %arg3[%c0_3, %c0_4] : memref<1x128xf32, #tpu.memory_space<vmem>>, vector<1x128xf32>
    %4 = vector.broadcast %3 : vector<1x128xf32> to vector<16x128xf32>
    %5 = arith.addf %2, %4 : vector<16x128xf32>
    %c0_5 = arith.constant 0 : index
    %6 = memref.load %arg6[%c0_5] : memref<1xf32, #tpu.memory_space<smem>>
    %7 = vector.broadcast %6 : f32 to vector<16x128xf32>
    %8 = arith.mulf %0, %7 : vector<16x128xf32>
    %9 = arith.addf %5, %8 : vector<16x128xf32>
    %cst_6 = arith.constant dense<0.000000e+00> : vector<16xf32>
    %10 = vector.multi_reduction <add>, %9, %cst_6 [1] : vector<16x128xf32> to vector<16xf32>
    %11 = vector.shape_cast %10 : vector<16xf32> to vector<16x1xf32>
    %12 = arith.mulf %9, %9 : vector<16x128xf32>
    %cst_7 = arith.constant dense<0.000000e+00> : vector<16xf32>
    %13 = vector.multi_reduction <add>, %12, %cst_7 [1] : vector<16x128xf32> to vector<16xf32>
    %14 = vector.shape_cast %13 : vector<16xf32> to vector<16x1xf32>
    %cst_8 = arith.constant 3.125000e-02 : f32
    %15 = vector.broadcast %cst_8 : f32 to vector<16x1xf32>
    %16 = arith.mulf %11, %15 : vector<16x1xf32>
    %cst_9 = arith.constant 3.125000e-02 : f32
    %17 = vector.broadcast %cst_9 : f32 to vector<16x1xf32>
    %18 = arith.mulf %14, %17 : vector<16x1xf32>
    %19 = arith.mulf %16, %16 : vector<16x1xf32>
    %20 = arith.subf %18, %19 : vector<16x1xf32>
    %cst_10 = arith.constant 0.000000e+00 : f32
    %21 = vector.broadcast %cst_10 : f32 to vector<16x1xf32>
    %22 = arith.maximumf %20, %21 : vector<16x1xf32>
    %23 = vector.broadcast %16 : vector<16x1xf32> to vector<16x128xf32>
    %24 = arith.subf %9, %23 : vector<16x128xf32>
    %cst_11 = arith.constant 9.99999974E-6 : f32
    %25 = vector.broadcast %cst_11 : f32 to vector<16x1xf32>
    %26 = arith.addf %22, %25 : vector<16x1xf32>
    %27 = math.rsqrt %26 : vector<16x1xf32>
    %28 = vector.broadcast %27 : vector<16x1xf32> to vector<16x128xf32>
    %29 = arith.mulf %24, %28 : vector<16x128xf32>
    %c0_12 = arith.constant 0 : index
    %c0_13 = arith.constant 0 : index
    %30 = vector.load %arg4[%c0_12, %c0_13] : memref<1x128xf32, #tpu.memory_space<vmem>>, vector<1x128xf32>
    %31 = vector.broadcast %30 : vector<1x128xf32> to vector<16x128xf32>
    %32 = arith.mulf %29, %31 : vector<16x128xf32>
    %c0_14 = arith.constant 0 : index
    %c0_15 = arith.constant 0 : index
    %33 = vector.load %arg5[%c0_14, %c0_15] : memref<1x128xf32, #tpu.memory_space<vmem>>, vector<1x128xf32>
    %34 = vector.broadcast %33 : vector<1x128xf32> to vector<16x128xf32>
    %35 = arith.addf %32, %34 : vector<16x128xf32>
    %c0_16 = arith.constant 0 : index
    %c0_17 = arith.constant 0 : index
    %36 = vector.load %arg7[%c0_16, %c0_17] : memref<16x128xf32, #tpu.memory_space<vmem>>, vector<16x128xf32>
    tpu.vector_store %arg7[%c0_16, %c0_17], %35 {strides = array<i32>} : memref<16x128xf32, #tpu.memory_space<vmem>>, vector<16x128xf32>,
    return
  }
  func.func @transform_0(%arg0: i32) -> (i32, i32) {
    %c0_i32 = arith.constant 0 : i32
    %c0_i32_0 = arith.constant 0 : i32
    return %arg0, %c0_i32 : i32, i32
  }
  func.func @transform_1(%arg0: i32) -> (i32, i32) {
    %c0_i32 = arith.constant 0 : i32
    %c0_i32_0 = arith.constant 0 : i32
    %c0_i32_1 = arith.constant 0 : i32
    return %c0_i32, %c0_i32_0 : i32, i32
  }
  func.func @transform_2(%arg0: i32) -> (i32, i32) {
    %c0_i32 = arith.constant 0 : i32
    %c0_i32_0 = arith.constant 0 : i32
    %c0_i32_1 = arith.constant 0 : i32
    return %c0_i32, %c0_i32_0 : i32, i32
  }
  func.func @transform_3(%arg0: i32) -> (i32, i32) {
    %c0_i32 = arith.constant 0 : i32
    %c0_i32_0 = arith.constant 0 : i32
    %c0_i32_1 = arith.constant 0 : i32
    return %c0_i32, %c0_i32_0 : i32, i32
  }
  func.func @transform_4(%arg0: i32) -> (i32, i32) {
    %c0_i32 = arith.constant 0 : i32
    %c0_i32_0 = arith.constant 0 : i32
    %c0_i32_1 = arith.constant 0 : i32
    return %c0_i32, %c0_i32_0 : i32, i32
  }
  func.func @transform_5(%arg0: i32) -> i32 {
    %c0_i32 = arith.constant 0 : i32
    %c0_i32_0 = arith.constant 0 : i32
    return %c0_i32 : i32
  }
  func.func @transform_6(%arg0: i32) -> (i32, i32) {
    %c0_i32 = arith.constant 0 : i32
    %c0_i32_0 = arith.constant 0 : i32
    return %arg0, %c0_i32 : i32, i32
  }
}

</mosaic_0001>

<llo_original>
// kernel: tpu_custom_call.1
$region0: #{tpu_custom_call.1}
  #allocation0 [shape = 'u32[]', space=smem, size = 0x4, offset = 0x4, fixed_abs, tag = 'smem constant byte address 0x4 - core index']
  #allocation1 [shape = 'u32[144,128]{1,0:T(1,128)}', space=vmem, size = 0x12000, scoped, tag = 'internal scratch']
  #allocation2 [shape = 'f32[1]{0:T(128)S(6)}', space=smem, size = 0x200, scoped, tag = 'scoped memory for tpu_custom_call.1']
  %s0 = inlined_call_operand.hbm [shape: f32[16,128], index: 0, kind: input, shape index: {}]
  %s1 = inlined_call_operand.hbm [shape: f32[128,128], index: 1, kind: input, shape index: {}]
  %s2 = inlined_call_operand.vmem [shape: f32[1,128], index: 2, kind: input, shape index: {}]
  %s3 = inlined_call_operand.vmem [shape: f32[1,128], index: 3, kind: input, shape index: {}]
  %s4 = inlined_call_operand.vmem [shape: f32[1,128], index: 4, kind: input, shape index: {}]
  %s5 = inlined_call_operand.<no memory space> [shape: f32[1], index: 5, kind: input, shape index: {}]
  %s6 = inlined_call_operand.hbm [shape: f32[16,128], index: 6, kind: output, shape index: {}]
  %s7 = sld [smem:[#allocation0]]
  $region42: #{tpu_custom_call.1} parent=0
    _
  %s9 = ssub.s32 1, %s7
  %s10 = scalar_select 0, %s9, %s7
  %11 = sst [smem:[#allocation2]] %s5
  $region1: #{tpu_custom_call.1} parent=0
    #allocation3 [shape = 'u8[8192]{0}', space=vmem, size = 0x2000, scoped, tag = 'input window, operand 0, single buffered']
    #allocation4 [shape = 's32[1]{0}', space=sflag, size = 0x4, scoped, tag = 'scoped memory for tpu_custom_call.1']
    #allocation5 [shape = 's32[1]{0}', space=sflag, size = 0x4, scoped, tag = 'scoped memory for tpu_custom_call.1']
    #allocation6 [shape = 'u8[65536]{0}', space=vmem, size = 0x10000, scoped, tag = 'input window, operand 1, single buffered']
    #allocation7 [shape = 's32[1]{0}', space=sflag, size = 0x4, scoped, tag = 'scoped memory for tpu_custom_call.1']
    #allocation8 [shape = 'u8[8192]{0}', space=vmem, size = 0x2000, scoped, tag = 'output window, operand 0, single buffered']
    %12 = vsyncpa [#allocation4], 0
    %13 = vsyncpa [#allocation7], 0
    %14 = vsyncpa [#allocation5], 0
    // Predicated region
    $region2: #{tpu_custom_call.1} parent=1 // pred_check
      _
    $region3: #{tpu_custom_call.1} parent=1 // pred_check_branch
      %16 = sbr.rel (0) target = $region5
    $region4: #{tpu_custom_call.1} parent=1 // pred_region
      %s18 = ssub.s32 256, 256
      %19 = vsyncadd [#allocation4], %s18
      %s20 = sshll.u32 [#allocation3], 4
      %s21 = int_to_ptr.vmem [resolvable:$true] %s20
      %26 = dma.hbm_to_vmem [thread:$0]  %s0, 256, %s21, [#allocation4], 128, 128, 8
    $region5: #{tpu_custom_call.1} parent=1 // pred_fallthru
      _
    // Predicated region
    $region6: #{tpu_custom_call.1} parent=1 // pred_check
      _
    $region7: #{tpu_custom_call.1} parent=1 // pred_check_branch
      %28 = sbr.rel (0) target = $region9
    $region8: #{tpu_custom_call.1} parent=1 // pred_region
      %s30 = ssub.s32 2048, 2048
      %31 = vsyncadd [#allocation7], %s30
      %s32 = sshll.u32 [#allocation6], 4
      %s33 = int_to_ptr.vmem [resolvable:$true] %s32
      %38 = dma.hbm_to_vmem [thread:$0]  %s1, 2048, %s33, [#allocation7], 128, 128, 8
    $region9: #{tpu_custom_call.1} parent=1 // pred_fallthru
      _
    // Predicated region
    $region10: #{tpu_custom_call.1} parent=1 // pred_check
      _
    $region11: #{tpu_custom_call.1} parent=1 // pred_check_branch
      %40 = sbr.rel (0) target = $region13
    $region12: #{tpu_custom_call.1} parent=1 // pred_region
      _
    $region13: #{tpu_custom_call.1} parent=1 // pred_fallthru
      _
    // Predicated region
    $region14: #{tpu_custom_call.1} parent=1 // pred_check
      _
    $region15: #{tpu_custom_call.1} parent=1 // pred_check_branch
      %42 = sbr.rel (0) target = $region17
    $region16: #{tpu_custom_call.1} parent=1 // pred_region
      _
    $region17: #{tpu_custom_call.1} parent=1 // pred_fallthru
      _
    // Predicated region
    $region18: #{tpu_custom_call.1} parent=1 // pred_check
      _
    $region19: #{tpu_custom_call.1} parent=1 // pred_check_branch
      %44 = sbr.rel (0) target = $region21
    $region20: #{tpu_custom_call.1} parent=1 // pred_region
      _
    $region21: #{tpu_custom_call.1} parent=1 // pred_fallthru
      _
    // Predicated region
    $region22: #{tpu_custom_call.1} parent=1 // pred_check
      _
    $region23: #{tpu_custom_call.1} parent=1 // pred_check_branch
      %46 = sbr.rel (0) target = $region25
    $region24: #{tpu_custom_call.1} parent=1 // pred_region
      _
    $region25: #{tpu_custom_call.1} parent=1 // pred_fallthru
      _
    // Predicated region
    $region26: #{tpu_custom_call.1} parent=1 // pred_check
      _
    $region27: #{tpu_custom_call.1} parent=1 // pred_check_branch
      %48 = sbr.rel (0) target = $region29
    $region28: #{tpu_custom_call.1} parent=1 // pred_region
      %49 = dma.done [#allocation4], 256
    $region29: #{tpu_custom_call.1} parent=1 // pred_fallthru
      _
    // Predicated region
    $region30: #{tpu_custom_call.1} parent=1 // pred_check
      _
    $region31: #{tpu_custom_call.1} parent=1 // pred_check_branch
      %51 = sbr.rel (0) target = $region33
    $region32: #{tpu_custom_call.1} parent=1 // pred_region
      %52 = dma.done [#allocation7], 2048
    $region33: #{tpu_custom_call.1} parent=1 // pred_fallthru
      _
    %v53 = vld [vmem:[#allocation3] sm:$0xff]
    %v54 = vld [vmem:[#allocation3 + $0x8] sm:$0xff]
    %v55 = vld [vmem:[#allocation6] sm:$0xff]
    %v56 = vld [vmem:[#allocation6 + $0x8] sm:$0xff]
    %v57 = vld [vmem:[#allocation6 + $0x10] sm:$0xff]
    %v58 = vld [vmem:[#allocation6 + $0x18] sm:$0xff]
    %v59 = vld [vmem:[#allocation6 + $0x20] sm:$0xff]
    %v60 = vld [vmem:[#allocation6 + $0x28] sm:$0xff]
    %v61 = vld [vmem:[#allocation6 + $0x30] sm:$0xff]
    %v62 = vld [vmem:[#allocation6 + $0x38] sm:$0xff]
    %v63 = vld [vmem:[#allocation6 + $0x40] sm:$0xff]
    %v64 = vld [vmem:[#allocation6 + $0x48] sm:$0xff]
    %v65 = vld [vmem:[#allocation6 + $0x50] sm:$0xff]
    %v66 = vld [vmem:[#allocation6 + $0x58] sm:$0xff]
    %v67 = vld [vmem:[#allocation6 + $0x60] sm:$0xff]
    %v68 = vld [vmem:[#allocation6 + $0x68] sm:$0xff]
    %v69 = vld [vmem:[#allocation6 + $0x70] sm:$0xff]
    %v70 = vld [vmem:[#allocation6 + $0x78] sm:$0xff]
    %v71 = vld [vmem:[%s2] sm:$0x1]
    %v73 = vlaneseq
    %v74 = vshrl.u32 %v73, 7
    %v75 = vsub.s32 0, %v74
    %v76 = vrot.slane %v71, %v75
    %78 = vmatprep.subr.mxu0 0.0
    %79 = vmatpush1.msra.mxu0 %v55
    %80 = vmatprep.subr.mxu0 0.0
    %81 = vmatpush1.msra.mxu0 %v56
    %82 = vmatprep.subr.mxu0 0.0
    %83 = vmatpush1.msra.mxu0 %v57
    %84 = vmatprep.subr.mxu0 0.0
    %85 = vmatpush1.msra.mxu0 %v58
    %86 = vmatprep.subr.mxu0 0.0
    %87 = vmatpush1.msra.mxu0 %v59
    %88 = vmatprep.subr.mxu0 0.0
    %89 = vmatpush1.msra.mxu0 %v60
    %90 = vmatprep.subr.mxu0 0.0
    %91 = vmatpush1.msra.mxu0 %v61
    %92 = vmatprep.subr.mxu0 0.0
    %93 = vmatpush1.msra.mxu0 %v62
    %94 = vmatprep.subr.mxu0 0.0
    %95 = vmatpush1.msra.mxu0 %v63
    %96 = vmatprep.subr.mxu0 0.0
    %97 = vmatpush1.msra.mxu0 %v64
    %98 = vmatprep.subr.mxu0 0.0
    %99 = vmatpush1.msra.mxu0 %v65
    %100 = vmatprep.subr.mxu0 0.0
    %101 = vmatpush1.msra.mxu0 %v66
    %102 = vmatprep.subr.mxu0 0.0
    %103 = vmatpush1.msra.mxu0 %v67
    %104 = vmatprep.subr.mxu0 0.0
    %105 = vmatpush1.msra.mxu0 %v68
    %106 = vmatprep.subr.mxu0 0.0
    %107 = vmatpush1.msra.mxu0 %v69
    %108 = vmatprep.subr.mxu0 0.0
    %109 = vmatpush1.msra.mxu0 %v70
    %110 = vmatprep.subr.mxu0 0.0
    %111 = vmatpush1.msra.mxu0 0.0
    %112 = vmatprep.subr.mxu0 0.0
    %113 = vmatpush1.msra.mxu0 0.0
    %114 = vmatprep.subr.mxu0 0.0
    %115 = vmatpush1.msra.mxu0 0.0
    %116 = vmatprep.subr.mxu0 0.0
    %117 = vmatpush1.msra.mxu0 0.0
    %118 = vmatprep.subr.mxu0 0.0
    %119 = vmatpush1.msra.mxu0 0.0
    %120 = vmatprep.subr.mxu0 0.0
    %121 = vmatpush1.msra.mxu0 0.0
    %122 = vmatprep.subr.mxu0 0.0
    %123 = vmatpush1.msra.mxu0 0.0
    %124 = vmatprep.subr.mxu0 0.0
    %125 = vmatpush1.msra.mxu0 0.0
    %126 = vmatprep.subr.mxu0 0.0
    %127 = vmatpush1.msra.mxu0 0.0
    %128 = vmatprep.subr.mxu0 0.0
    %129 = vmatpush1.msra.mxu0 0.0
    %130 = vmatprep.subr.mxu0 0.0
    %131 = vmatpush1.msra.mxu0 0.0
    %132 = vmatprep.subr.mxu0 0.0
    %133 = vmatpush1.msra.mxu0 0.0
    %134 = vmatprep.subr.mxu0 0.0
    %135 = vmatpush1.msra.mxu0 0.0
    %136 = vmatprep.subr.mxu0 0.0
    %137 = vmatpush1.msra.mxu0 0.0
    %138 = vmatprep.subr.mxu0 0.0
    %139 = vmatpush1.msra.mxu0 0.0
    %140 = vmatprep.subr.mxu0 0.0
    %141 = vmatpush1.msra.mxu0 0.0
    %142 = vmatprep.mubr.f32.mxu0 0.0
    %143 = vmatmul.mubr.f32.gmra.mrb[0].mxu0 %v53
    %v144 = vpop.f32.mrb[0].mxu0
    %v145 = vadd.f32 %v76, %v144
    %v146 = vpop.f32.mrb[0].mxu0
    %147 = vmatprep.mubr.f32.mxu0 0.0
    %148 = vmatmul.mubr.f32.gmra.mrb[0].mxu0 %v54
    %v149 = vpop.f32.mrb[0].mxu0
    %v150 = vadd.f32 %v76, %v149
    %v151 = vpop.f32.mrb[0].mxu0
    %152 = vdwg.mxu0
    %s153 = sld [smem:[#allocation2]]
    %v154 = vstv %s153
    %v155 = vmul.f32 %v53, %v154
    %v156 = vmul.f32 %v54, %v154
    %v157 = vadd.f32 %v145, %v155
    %v158 = vadd.f32 %v150, %v156
    %159 = vadd.xlane.f32.xlu0 %v157
    %v160 = vpop.xlane.xlu0 %159
    %161 = vadd.xlane.f32.xlu0 %v158
    %v162 = vpop.xlane.xlu0 %161
    %v163 = vmul.f32 %v157, %v157
    %v164 = vmul.f32 %v158, %v158
    %165 = vadd.xlane.f32.xlu0 %v163
    %v166 = vpop.xlane.xlu0 %165
    %167 = vadd.xlane.f32.xlu0 %v164
    %v168 = vpop.xlane.xlu0 %167
    %v169 = vmul.f32 %v160, 0.03125
    %v170 = vmul.f32 %v162, 0.03125
    %v171 = vmul.f32 %v166, 0.03125
    %v172 = vmul.f32 %v168, 0.03125
    %v173 = vmul.f32 %v169, %v169
    %v174 = vmul.f32 %v170, %v170
    %v175 = vsub.f32 %v171, %v173
    %v176 = vsub.f32 %v172, %v174
    %v177 = vmax.f32 %v175, 0.0
    %v178 = vmax.f32 %v176, 0.0
    %v179 = vsub.f32 %v157, %v169
    %v180 = vsub.f32 %v158, %v170
    %v181 = vadd.f32 %v177, 1e-05
    %v182 = vadd.f32 %v178, 1e-05
    %v183 = vrsqrt.pop %v181
    %v184 = vrsqrt.pop %v182
    %v185 = vmul.f32 %v179, %v183
    %v186 = vmul.f32 %v180, %v184
    %v187 = vld [vmem:[%s3] sm:$0x1]
    %v189 = vlaneseq
    %v190 = vshrl.u32 %v189, 7
    %v191 = vsub.s32 0, %v190
    %v192 = vrot.slane %v187, %v191
    %v194 = vmul.f32 %v185, %v192
    %v195 = vmul.f32 %v186, %v192
    %v196 = vld [vmem:[%s4] sm:$0x1]
    %v198 = vlaneseq
    %v199 = vshrl.u32 %v198, 7
    %v200 = vsub.s32 0, %v199
    %v201 = vrot.slane %v196, %v200
    %v203 = vadd.f32 %v194, %v201
    %v204 = vadd.f32 %v195, %v201
    %205 = vst [vmem:[#allocation8] sm:$0xff] %v203
    %206 = vst [vmem:[#allocation8 + $0x8] sm:$0xff] %v204
    // Predicated region
    $region34: #{tpu_custom_call.1} parent=1 // pred_check
      _
    $region35: #{tpu_custom_call.1} parent=1 // pred_check_branch
      %208 = sbr.rel (0) target = $region37
    $region36: #{tpu_custom_call.1} parent=1 // pred_region
      %s210 = ssub.s32 256, 256
      %211 = vsyncadd [#allocation5], %s210
      %s212 = sshll.u32 [#allocation8], 4
      %s213 = int_to_ptr.vmem [resolvable:$true] %s212
      %218 = dma.vmem_to_hbm [thread:$0]  %s213, 256, %s6, [#allocation5], 128, 128, 8
    $region37: #{tpu_custom_call.1} parent=1 // pred_fallthru
      _
    // Predicated region
    $region38: #{tpu_custom_call.1} parent=1 // pred_check
      _
    $region39: #{tpu_custom_call.1} parent=1 // pred_check_branch
      %220 = sbr.rel (0) target = $region41
    $region40: #{tpu_custom_call.1} parent=1 // pred_region
      %221 = dma.done [#allocation5], 256
    $region41: #{tpu_custom_call.1} parent=1 // pred_fallthru
      _
    %222 = vsyncpa [#allocation4], 1
    %223 = vsyncpa [#allocation7], 1
    %224 = vsyncpa [#allocation5], 1

</llo_original>
